<compile_context>
chip_gen: v7x
topology: tpu7x:2x2x1
jax: 0.10.0
libtpu: 0.0.40
codegen_flags: <defaults>
</compile_context>

<pallas_src>
import jax
import jax.numpy as jnp
from jax.experimental import pallas as pl
from jax.experimental.pallas import tpu as pltpu


def _round_up(v, m):
    return ((v + m - 1) // m) * m


def _pick_m_block(m, cap, align, min_blocks=2):
    """Aligned M tile <= cap that minimizes ragged-edge waste.

    E.g. m=300, cap=256 -> 152 (2 steps, <3% dead MXU rows) instead of 256
    (41% dead rows).  Also tries to emit >= min_blocks grid steps so the v7x
    megacore can shard the 'parallel' M axis across both TensorCores (the
    extra ~0.35us/step is negligible on single-core chips).
    """
    m_pad = _round_up(max(m, 1), align)
    steps = max(min_blocks, pl.cdiv(m_pad, cap))
    steps = min(steps, m_pad // align)  # never smaller than one aligned row group
    return _round_up(pl.cdiv(m_pad, steps), align)


def _cost_estimate(m, n, k, in_dtype, out_dtype):
    db_in = jnp.dtype(in_dtype).itemsize
    db_out = jnp.dtype(out_dtype).itemsize
    return pl.CostEstimate(
        flops=2 * m * n * k,
        transcendentals=0,
        bytes_accessed=(m * k + n * k + n) * db_in + m * n * db_out)


# ---------------------------------------------------------------------------
# Kernels
# ---------------------------------------------------------------------------

def _linear_wres_kernel(x_ref, w_ref, b_ref, o_ref):
    # Weight-resident path.
    #   x_ref: (TM, K)   w_ref: (N, K)   b_ref: (1, N)   o_ref: (TM, N)
    # Contract K against the untransposed [out, in] weight (== pl.dot trans_b);
    # the MXU handles the transposed RHS natively.
    acc = jax.lax.dot_general(
        x_ref[...], w_ref[...],
        dimension_numbers=(((1,), (1,)), ((), ())),
        preferred_element_type=jnp.float32)
    o_ref[...] = (acc + b_ref[...].astype(jnp.float32)).astype(o_ref.dtype)


def _linear_ktiled_kernel(x_ref, w_ref, b_ref, o_ref, acc_ref):
    # K-reduction fallback for weights too large to keep resident in VMEM.
    #   x_ref: (TM, TK)  w_ref: (TN, TK)  b_ref: (1, TN)  o_ref: (TM, TN)
    kk = pl.program_id(2)

    @pl.when(kk == 0)
    def _():
        acc_ref[...] = jnp.zeros_like(acc_ref)

    acc_ref[...] += jax.lax.dot_general(
        x_ref[...], w_ref[...],
        dimension_numbers=(((1,), (1,)), ((), ())),
        preferred_element_type=jnp.float32)

    @pl.when(kk == pl.num_programs(2) - 1)
    def _():
        o_ref[...] = (acc_ref[...] + b_ref[...].astype(jnp.float32)).astype(o_ref.dtype)


# ---------------------------------------------------------------------------
# pallas_call wrappers
# ---------------------------------------------------------------------------

def _pallas_linear_weight_resident(x2d, weight, bias2d, out_dtype, tm):
    m, k = x2d.shape
    n = weight.shape[0]
    m_align = 8 if jnp.dtype(x2d.dtype).itemsize >= 4 else 16
    blk_m = _pick_m_block(m, tm, m_align)
    grid = (pl.cdiv(m, blk_m),)

    return pl.pallas_call(
        _linear_wres_kernel,
        out_shape=jax.ShapeDtypeStruct((m, n), out_dtype),
        grid_spec=pltpu.PrefetchScalarGridSpec(
            num_scalar_prefetch=0,
            grid=grid,
            in_specs=[
                # x streams over M; ragged edge block is masked on store.
                pl.BlockSpec((blk_m, k), lambda i: (i, 0)),
                # Constant index_map: weight DMA'd into VMEM once, reused for
                # every M tile (no per-tile HBM re-stream).
                pl.BlockSpec((n, k), lambda i: (0, 0)),
                pl.BlockSpec((1, n), lambda i: (0, 0)),
            ],
            out_specs=pl.BlockSpec((blk_m, n), lambda i: (i, 0)),
        ),
        compiler_params=pltpu.CompilerParams(
            dimension_semantics=("parallel",),
            vmem_limit_bytes=32 * 1024 * 1024),
        cost_estimate=_cost_estimate(m, n, k, x2d.dtype, out_dtype),
    )(x2d, weight, bias2d)


def _pallas_linear_ktiled(x2d, weight, bias2d, out_dtype, tm, tn, tk):
    m, k = x2d.shape
    n = weight.shape[0]
    db = jnp.dtype(x2d.dtype).itemsize
    m_align = 8 if db >= 4 else 16

    blk_m = _pick_m_block(m, tm, m_align)
    blk_n = min(_round_up(n, 128), _round_up(tn, 128))
    # Keep blk_k >= 512: each extra K step re-reads/writes the full f32
    # accumulator tile and adds ~0.35us of pipeline overhead.
    blk_k = min(_round_up(k, 128), _round_up(max(tk, 512), 128))

    # K must be explicitly zero-padded when split: unlike M/N edge blocks
    # (masked on store), garbage in a ragged K remainder would be contracted
    # into valid outputs.  No-op when K is already a multiple of blk_k.
    kp = _round_up(k, blk_k)
    if kp != k:
        x2d = jnp.pad(x2d, ((0, 0), (0, kp - k)))
        weight = jnp.pad(weight, ((0, 0), (0, kp - k)))

    grid = (pl.cdiv(m, blk_m), pl.cdiv(n, blk_n), kp // blk_k)

    return pl.pallas_call(
        _linear_ktiled_kernel,
        out_shape=jax.ShapeDtypeStruct((m, n), out_dtype),
        grid_spec=pltpu.PrefetchScalarGridSpec(
            num_scalar_prefetch=0,
            grid=grid,
            in_specs=[
                pl.BlockSpec((blk_m, blk_k), lambda i, j, kk: (i, kk)),
                pl.BlockSpec((blk_n, blk_k), lambda i, j, kk: (j, kk)),
                pl.BlockSpec((1, blk_n), lambda i, j, kk: (0, j)),
            ],
            out_specs=pl.BlockSpec((blk_m, blk_n), lambda i, j, kk: (i, j)),
            scratch_shapes=[pltpu.VMEM((blk_m, blk_n), jnp.float32)],
        ),
        compiler_params=pltpu.CompilerParams(
            dimension_semantics=("parallel", "parallel", "arbitrary"),
            vmem_limit_bytes=32 * 1024 * 1024),
        cost_estimate=_cost_estimate(m, n, kp, x2d.dtype, out_dtype),
    )(x2d, weight, bias2d)


# ---------------------------------------------------------------------------
# Public forward
# ---------------------------------------------------------------------------

def solution_semantic_projection(x, weight, bias, *,
                                 tm=256, tn=512, tk=1024,
                                 compute_dtype=None,
                                 weight_vmem_budget_bytes=8 * 1024 * 1024,
                                 use_pallas=None):
    """nn.Linear(hidden, hidden) forward:  x @ W.T + b.

    x: [..., hidden]; weight: [hidden, hidden] (PyTorch [out, in]); bias: [hidden].
    compute_dtype: optionally cast MXU operands (jnp.bfloat16 recommended on
    v6e/v7x); accumulation stays f32.  For a weight reused every call, pass a
    pre-cast bf16 weight instead of relying on this per-call cast.
    """
    n, k = weight.shape
    lead = x.shape[:-1]
    x2d = x.reshape(-1, k)
    m = x2d.shape[0]

    if use_pallas is None:
        # Tiny matmuls: the Pallas fixed per-call cost dominates; let XLA fuse.
        use_pallas = (m * n * k) >= (1 << 20)

    if not use_pallas:
        out = x2d @ weight.T + bias
        return out.reshape(lead + (n,))

    out_dtype = x.dtype
    if compute_dtype is not None and compute_dtype != x2d.dtype:
        x2d = x2d.astype(compute_dtype)
        weight = weight.astype(compute_dtype)

    bias2d = bias.reshape(1, n)
    w_bytes = n * k * jnp.dtype(weight.dtype).itemsize

    if w_bytes <= weight_vmem_budget_bytes:
        out = _pallas_linear_weight_resident(x2d, weight, bias2d, out_dtype, tm)
    else:
        out = _pallas_linear_ktiled(x2d, weight, bias2d, out_dtype, tm, tn, tk)
    return out.reshape(lead + (n,))


# ---------------------------------------------------------------------------
# Demo / checks
# ---------------------------------------------------------------------------

if __name__ == "__main__":
    # ---- Check 1: module's nominal small shape (hidden=32, batch=2, seq=8);
    #      weight-resident path, full-K / full-N blocks, 2 M blocks. ----
    hidden = 32
    batch, seq = 2, 8
    kx, kw, kb = jax.random.split(jax.random.PRNGKey(0), 3)
    bound = 1.0 / (hidden ** 0.5)
    weight = jax.random.uniform(kw, (hidden, hidden), jnp.float32, -bound, bound)  # [out, in]
    bias = jax.random.uniform(kb, (hidden,), jnp.float32, -bound, bound)
    x = jax.random.normal(kx, (batch, seq, hidden), jnp.float32)

    y = solution_semantic_projection(x, weight, bias, use_pallas=True)
    jax.block_until_ready(y)
    y_ref = (jax.lax.dot_general(
        x.reshape(-1, hidden), weight,
        dimension_numbers=(((1,), (1,)), ((), ())),
        precision=jax.lax.Precision.HIGHEST).reshape(batch, seq, hidden) + bias)
    assert y.shape == (batch, seq, hidden)
    assert jnp.allclose(y, y_ref, atol=2e-5, rtol=2e-5)

    # ---- Check 2: ragged M (300 rows), weight-resident path: waste-minimizing
    #      blk_m and a masked edge block (no wrapper-side pad or slice). ----
    hidden2, rows2 = 384, 300
    k2x, k2w, k2b = jax.random.split(jax.random.PRNGKey(1), 3)
    bound2 = 1.0 / (hidden2 ** 0.5)
    weight2 = jax.random.uniform(k2w, (hidden2, hidden2), jnp.float32, -bound2, bound2)
    bias2 = jax.random.uniform(k2b, (hidden2,), jnp.float32, -bound2, bound2)
    x2 = jax.random.normal(k2x, (rows2, hidden2), jnp.float32)

    y2 = solution_semantic_projection(x2, weight2, bias2, use_pallas=True)
    jax.block_until_ready(y2)
    y2_ref = jax.lax.dot_general(
        x2, weight2, dimension_numbers=(((1,), (1,)), ((), ())),
        precision=jax.lax.Precision.HIGHEST) + bias2
    assert y2.shape == (rows2, hidden2)
    assert jnp.allclose(y2, y2_ref, atol=2e-4, rtol=2e-4)

    # ---- Check 3: forced K-tiled fallback path: multi-step K accumulation,
    #      explicit K zero-padding, masked M and N edge blocks. ----
    hidden3, rows3 = 640, 200
    k3x, k3w, k3b = jax.random.split(jax.random.PRNGKey(2), 3)
    bound3 = 1.0 / (hidden3 ** 0.5)
    weight3 = jax.random.uniform(k3w, (hidden3, hidden3), jnp.float32, -bound3, bound3)
    bias3 = jax.random.uniform(k3b, (hidden3,), jnp.float32, -bound3, bound3)
    x3 = jax.random.normal(k3x, (rows3, hidden3), jnp.float32)

    y3 = solution_semantic_projection(x3, weight3, bias3, tk=512,
                                      weight_vmem_budget_bytes=0, use_pallas=True)
    jax.block_until_ready(y3)
    y3_ref = jax.lax.dot_general(
        x3, weight3, dimension_numbers=(((1,), (1,)), ((), ())),
        precision=jax.lax.Precision.HIGHEST) + bias3
    assert y3.shape == (rows3, hidden3)
    assert jnp.allclose(y3, y3_ref, atol=5e-4, rtol=5e-4)

    # ---- Check 4: bf16 MXU operands (v6e/v7x fast path), f32 accumulation,
    #      16-aligned M tiles for sub-32-bit packing. ----
    hidden4, rows4 = 256, 64
    k4x, k4w, k4b = jax.random.split(jax.random.PRNGKey(3), 3)
    bound4 = 1.0 / (hidden4 ** 0.5)
    weight4 = jax.random.uniform(k4w, (hidden4, hidden4), jnp.float32, -bound4, bound4)
    bias4 = jax.random.uniform(k4b, (hidden4,), jnp.float32, -bound4, bound4)
    x4 = jax.random.normal(k4x, (rows4, hidden4), jnp.float32)

    y4 = solution_semantic_projection(x4, weight4, bias4,
                                      compute_dtype=jnp.bfloat16, use_pallas=True)
    jax.block_until_ready(y4)
    y4_ref = jax.lax.dot_general(
        x4, weight4, dimension_numbers=(((1,), (1,)), ((), ())),
        precision=jax.lax.Precision.HIGHEST) + bias4
    assert y4.shape == (rows4, hidden4)
    assert jnp.allclose(y4, y4_ref, atol=5e-2, rtol=5e-2)

    print("KERNEL_OK")
</pallas_src>

<mosaic_0001>
module attributes {stable_mosaic.version = 11 : i64} {
  func.func @_linear_wres_kernel(%arg0: i32, %arg1: memref<8x32xf32, #tpu.memory_space<vmem>>, %arg2: memref<32x32xf32, #tpu.memory_space<vmem>>, %arg3: memref<1x32xf32, #tpu.memory_space<vmem>>, %arg4: memref<8x32xf32, #tpu.memory_space<vmem>>) attributes {dimension_semantics = [#tpu.dimension_semantics<parallel>], iteration_bounds = array<i64: 2>, scalar_prefetch = 0 : i64, scratch_operands = 0 : i64, tpu.core_type = #tpu.core_type<tc>, window_params = [{transform_indices = @transform_0, window_bounds = array<i64: 8, 32>}, {pipeline_mode = #tpu.pipeline_mode<synchronous>, transform_indices = @transform_1, window_bounds = array<i64: 32, 32>}, {pipeline_mode = #tpu.pipeline_mode<synchronous>, transform_indices = @transform_2, window_bounds = array<i64: 1, 32>}, {transform_indices = @transform_3, window_bounds = array<i64: 8, 32>}]} {
    %c0 = arith.constant 0 : index
    %c0_0 = arith.constant 0 : index
    %0 = vector.load %arg1[%c0, %c0_0] : memref<8x32xf32, #tpu.memory_space<vmem>>, vector<8x32xf32>
    %c0_1 = arith.constant 0 : index
    %c0_2 = arith.constant 0 : index
    %1 = vector.load %arg2[%c0_1, %c0_2] : memref<32x32xf32, #tpu.memory_space<vmem>>, vector<32x32xf32>
    %cst = arith.constant dense<0.000000e+00> : vector<8x32xf32>
    %2 = tpu.matmul %0, %1, %cst {dimension_numbers = #tpu.dot_dimension_numbers<[1], [1], [0], [0], [0, 0, 1, 0], [], []>} : vector<8x32xf32>, vector<32x32xf32>, vector<8x32xf32> -> vector<8x32xf32>
    %c0_3 = arith.constant 0 : index
    %c0_4 = arith.constant 0 : index
    %3 = vector.load %arg3[%c0_3, %c0_4] : memref<1x32xf32, #tpu.memory_space<vmem>>, vector<1x32xf32>
    %4 = vector.broadcast %3 : vector<1x32xf32> to vector<8x32xf32>
    %5 = arith.addf %2, %4 : vector<8x32xf32>
    %c0_5 = arith.constant 0 : index
    %c0_6 = arith.constant 0 : index
    %6 = vector.load %arg4[%c0_5, %c0_6] : memref<8x32xf32, #tpu.memory_space<vmem>>, vector<8x32xf32>
    tpu.vector_store %arg4[%c0_5, %c0_6], %5 {strides = array<i32>} : memref<8x32xf32, #tpu.memory_space<vmem>>, vector<8x32xf32>,
    return
  }
  func.func @transform_0(%arg0: i32) -> (i32, i32) {
    %c0_i32 = arith.constant 0 : i32
    %c0_i32_0 = arith.constant 0 : i32
    return %arg0, %c0_i32 : i32, i32
  }
  func.func @transform_1(%arg0: i32) -> (i32, i32) {
    %c0_i32 = arith.constant 0 : i32
    %c0_i32_0 = arith.constant 0 : i32
    %c0_i32_1 = arith.constant 0 : i32
    return %c0_i32, %c0_i32_0 : i32, i32
  }
  func.func @transform_2(%arg0: i32) -> (i32, i32) {
    %c0_i32 = arith.constant 0 : i32
    %c0_i32_0 = arith.constant 0 : i32
    %c0_i32_1 = arith.constant 0 : i32
    return %c0_i32, %c0_i32_0 : i32, i32
  }
  func.func @transform_3(%arg0: i32) -> (i32, i32) {
    %c0_i32 = arith.constant 0 : i32
    %c0_i32_0 = arith.constant 0 : i32
    return %arg0, %c0_i32 : i32, i32
  }
}

</mosaic_0001>

<llo_original>
// kernel: tpu_custom_call.1
$region0: #{tpu_custom_call.1}
  #allocation0 [shape = 'u32[]', space=smem, size = 0x4, offset = 0x4, fixed_abs, tag = 'smem constant byte address 0x4 - core index']
  #allocation1 [shape = 'u32[144,128]{1,0:T(1,128)}', space=vmem, size = 0x12000, scoped, tag = 'internal scratch']
  %s0 = inlined_call_operand.hbm [shape: f32[16,32], index: 0, kind: input, shape index: {}]
  %s1 = inlined_call_operand.hbm [shape: f32[32,32], index: 1, kind: input, shape index: {}]
  %s2 = inlined_call_operand.vmem [shape: f32[1,32], index: 2, kind: input, shape index: {}]
  %s3 = inlined_call_operand.hbm [shape: f32[16,32], index: 3, kind: output, shape index: {}]
  %s4 = sld [smem:[#allocation0]]
  $region53: #{tpu_custom_call.1} parent=0
    _
  %s6 = ssub.s32 1, %s4
  %s7 = scalar_select 0, %s6, %s4
  $region1: #{tpu_custom_call.1} parent=0
    #allocation2 [shape = 'u8[8192]{0}', space=vmem, size = 0x2000, scoped, tag = 'input window, operand 0']
    #allocation3 [shape = 's32[2]{0}', space=sflag, size = 0x8, scoped, tag = 'scoped memory for tpu_custom_call.1']
    #allocation4 [shape = 's32[2]{0}', space=sflag, size = 0x8, scoped, tag = 'scoped memory for tpu_custom_call.1']
    #allocation5 [shape = 'u8[16384]{0}', space=vmem, size = 0x4000, scoped, tag = 'input window, operand 1, single buffered']
    #allocation6 [shape = 's32[1]{0}', space=sflag, size = 0x4, scoped, tag = 'scoped memory for tpu_custom_call.1']
    #allocation7 [shape = 'u8[8192]{0}', space=vmem, size = 0x2000, scoped, tag = 'output window, operand 0']
    %8 = vsyncpa [#allocation3], 0
    %s9 = scalar_lea.sflag [#allocation3], 1
    %10 = vsyncpa %s9, 0
    %11 = vsyncpa [#allocation6], 0
    %12 = vsyncpa [#allocation4], 0
    %s13 = scalar_lea.sflag [#allocation4], 1
    %14 = vsyncpa %s13, 0
    loop: start=0, step=1, limit=4
    $region2: #{tpu_custom_call.1} parent=1 // loop_pre_header
      _
    $region3: #{tpu_custom_call.1} parent=1 // loop_header
      %s16 = sphi 0, %s20
      %p17 = scmp.ge.s32.totalorder %s16, 4
      %s26 = sphi 0, %s28
      %s29 = sphi 0, %s26
      %s30 = sphi 0, %s29
      %s46 = sphi 0, %s30
      %s50 = sphi 0, %s50
      %s52 = sphi 0, %s50
      %s53 = sphi 0, %s52
      %s67 = sphi 0, %s53
      %s71 = sphi 0, %s71
      %s73 = sphi 0, %s71
      %s74 = sphi 0, %s73
      %s88 = sphi 0, %s74
      %s94 = sphi 0, %s96
      %s97 = sphi 0, %s94
      %s98 = sphi 0, %s97
      %s114 = sphi 0, %s98
    $region4: #{tpu_custom_call.1} parent=1 // loop_header_branch
      %19 = sbr.rel (%p17) target = $region8
    $region5: #{tpu_custom_call.1} parent=1 // loop_body
      %s21 = ssub.s32 %s16, 1
      %s22 = ssub.s32 %s16, 2
      %s23 = sadd.s32 %s16, 1
      %s24 = ssub.s32 %s16, %s23
      %p25 = scmp.eq.s32.totalorder %s24, 0
      %s27 = sadd.s32 %s26, 1
      %s28 = scalar_select %p25, %s26, %s27
      %p31 = pneg %p25
      %p32 = scmp.eq.s32.totalorder %s16, 1
      %p33 = por %p31, %p32
      %p34 = scmp.ne.s32.totalorder %s26, %s29
      %p35 = scmp.eq.s32.totalorder %s16, 0
      %p36 = por %p34, %p35
      %p37 = scmp.ne.s32.totalorder %s26, %s29
      %p38 = scmp.eq.s32.totalorder %s21, 1
      %p39 = por %p37, %p38
      %p40 = scmp.ne.s32.totalorder %s29, %s30
      %p41 = scmp.eq.s32.totalorder %s21, 0
      %p42 = por %p40, %p41
      %p43 = scmp.ne.s32.totalorder %s29, %s30
      %p44 = scmp.eq.s32.totalorder %s22, 1
      %p45 = por %p43, %p44
      %p47 = scmp.ne.s32.totalorder %s30, %s46
      %p48 = scmp.eq.s32.totalorder %s22, 0
      %p49 = por %p47, %p48
      %s51 = sadd.s32 %s50, 1
      %p54 = scmp.eq.s32.totalorder %s16, 1
      %p55 = scmp.ne.s32.totalorder %s50, %s52
      %p56 = scmp.eq.s32.totalorder %s16, 0
      %p57 = por %p55, %p56
      %p58 = scmp.ne.s32.totalorder %s50, %s52
      %p59 = scmp.eq.s32.totalorder %s21, 1
      %p60 = por %p58, %p59
      %p61 = scmp.ne.s32.totalorder %s52, %s53
      %p62 = scmp.eq.s32.totalorder %s21, 0
      %p63 = por %p61, %p62
      %p64 = scmp.ne.s32.totalorder %s52, %s53
      %p65 = scmp.eq.s32.totalorder %s22, 1
      %p66 = por %p64, %p65
      %p68 = scmp.ne.s32.totalorder %s53, %s67
      %p69 = scmp.eq.s32.totalorder %s22, 0
      %p70 = por %p68, %p69
      %s72 = sadd.s32 %s71, 1
      %p75 = scmp.eq.s32.totalorder %s16, 1
      %p76 = scmp.ne.s32.totalorder %s71, %s73
      %p77 = scmp.eq.s32.totalorder %s16, 0
      %p78 = por %p76, %p77
      %p79 = scmp.ne.s32.totalorder %s71, %s73
      %p80 = scmp.eq.s32.totalorder %s21, 1
      %p81 = por %p79, %p80
      %p82 = scmp.ne.s32.totalorder %s73, %s74
      %p83 = scmp.eq.s32.totalorder %s21, 0
      %p84 = por %p82, %p83
      %p85 = scmp.ne.s32.totalorder %s73, %s74
      %p86 = scmp.eq.s32.totalorder %s22, 1
      %p87 = por %p85, %p86
      %p89 = scmp.ne.s32.totalorder %s74, %s88
      %p90 = scmp.eq.s32.totalorder %s22, 0
      %p91 = por %p89, %p90
      %s92 = ssub.s32 %s16, %s23
      %p93 = scmp.eq.s32.totalorder %s92, 0
      %s95 = sadd.s32 %s94, 1
      %s96 = scalar_select %p93, %s94, %s95
      %p99 = pneg %p93
      %p100 = scmp.eq.s32.totalorder %s16, 1
      %p101 = por %p99, %p100
      %p102 = scmp.ne.s32.totalorder %s94, %s97
      %p103 = scmp.eq.s32.totalorder %s16, 0
      %p104 = por %p102, %p103
      %p105 = scmp.ne.s32.totalorder %s94, %s97
      %p106 = scmp.eq.s32.totalorder %s21, 1
      %p107 = por %p105, %p106
      %p108 = scmp.ne.s32.totalorder %s97, %s98
      %p109 = scmp.eq.s32.totalorder %s21, 0
      %p110 = por %p108, %p109
      %p111 = scmp.ne.s32.totalorder %s97, %s98
      %p112 = scmp.eq.s32.totalorder %s22, 1
      %p113 = por %p111, %p112
      %p115 = scmp.ne.s32.totalorder %s98, %s114
      %p116 = scmp.eq.s32.totalorder %s22, 0
      %p117 = por %p115, %p116
      %p118 = scmp.le.s32.totalorder 1, %s16
      %p119 = scmp.lt.s32.totalorder %s16, 3
      %p120 = pnand %p118, %p119
      %p121 = pneg %p120
      // Predicated region
      $region9: #{tpu_custom_call.1} parent=5 // pred_check
        _
      $region10: #{tpu_custom_call.1} parent=5 // pred_check_branch
        %123 = sbr.rel (%p120) target = $region12
      $region11: #{tpu_custom_call.1} parent=5 // pred_region
        %s124 = ssub.s32 %s16, 1
        // Predicated region
        $region13: #{tpu_custom_call.1} parent=11 // pred_check
          %p125 = pneg %p63
        $region14: #{tpu_custom_call.1} parent=11 // pred_check_branch
          %127 = sbr.rel (%p125) target = $region16
        $region15: #{tpu_custom_call.1} parent=11 // pred_region
          %s129 = ssub.s32 512, 512
          %130 = vsyncadd [#allocation6], %s129
          %s131 = sshll.u32 [#allocation5], 4
          %s132 = int_to_ptr.vmem [resolvable:$true] %s131
          %137 = dma.hbm_to_vmem [thread:$0]  %s1, 512, %s132, [#allocation6], 128, 128, 8
        $region16: #{tpu_custom_call.1} parent=11 // pred_fallthru
          _
        // Predicated region
        $region17: #{tpu_custom_call.1} parent=11 // pred_check
          %p138 = pneg %p84
        $region18: #{tpu_custom_call.1} parent=11 // pred_check_branch
          %140 = sbr.rel (%p138) target = $region20
        $region19: #{tpu_custom_call.1} parent=11 // pred_region
          _
        $region20: #{tpu_custom_call.1} parent=11 // pred_fallthru
          _
      $region12: #{tpu_custom_call.1} parent=5 // pred_fallthru
        _
      %p141 = scmp.lt.s32.totalorder %s16, 2
      // Predicated region
      $region21: #{tpu_custom_call.1} parent=5 // pred_check
        %p142 = pneg %p141
      $region22: #{tpu_custom_call.1} parent=5 // pred_check_branch
        %144 = sbr.rel (%p142) target = $region24
      $region23: #{tpu_custom_call.1} parent=5 // pred_region
        // Predicated region
        $region25: #{tpu_custom_call.1} parent=23 // pred_check
          %p145 = pneg %p36
        $region26: #{tpu_custom_call.1} parent=23 // pred_check_branch
          %147 = sbr.rel (%p145) target = $region28
        $region27: #{tpu_custom_call.1} parent=23 // pred_region
          %s148 = sand.u32 %s26, 1
          %s149 = scalar_lea.sflag [#allocation3], %s148
          %s150 = sand.u32 %s26, 1
          %s151 = smul.addr %s150, 8
          %s152 = scalar_lea.vmem [#allocation2], %s151
          %s154 = ssub.s32 128, 128
          %155 = vsyncadd %s149, %s154
          %s156 = smul.addr %s16, 128
          %s157 = scalar_lea.hbm %s0, %s156
          %s159 = sshll.u32 %s152, 4
          %s160 = int_to_ptr.vmem [resolvable:$true] %s159
          %162 = dma.hbm_to_vmem [thread:$0]  %s157, 128, %s160, %s149
        $region28: #{tpu_custom_call.1} parent=23 // pred_fallthru
          _
      $region24: #{tpu_custom_call.1} parent=5 // pred_fallthru
        _
      %p163 = scmp.le.s32.totalorder 1, %s16
      %p164 = scmp.lt.s32.totalorder %s16, 3
      %p165 = pnand %p163, %p164
      %p166 = pneg %p165
      // Predicated region
      $region29: #{tpu_custom_call.1} parent=5 // pred_check
        _
      $region30: #{tpu_custom_call.1} parent=5 // pred_check_branch
        %168 = sbr.rel (%p165) target = $region32
      $region31: #{tpu_custom_call.1} parent=5 // pred_region
        %s169 = ssub.s32 %s16, 1
        %s170 = sand.u32 %s29, 1
        %s171 = scalar_lea.sflag [#allocation3], %s170
        %s172 = sand.u32 %s29, 1
        %s173 = smul.addr %s172, 8
        %s174 = scalar_lea.vmem [#allocation2], %s173
        // Predicated region
        $region33: #{tpu_custom_call.1} parent=31 // pred_check
          %p175 = pneg %p42
        $region34: #{tpu_custom_call.1} parent=31 // pred_check_branch
          %177 = sbr.rel (%p175) target = $region36
        $region35: #{tpu_custom_call.1} parent=31 // pred_region
          %178 = dma.done %s171, 128
        $region36: #{tpu_custom_call.1} parent=31 // pred_fallthru
          _
        // Predicated region
        $region37: #{tpu_custom_call.1} parent=31 // pred_check
          %p179 = pneg %p63
        $region38: #{tpu_custom_call.1} parent=31 // pred_check_branch
          %181 = sbr.rel (%p179) target = $region40
        $region39: #{tpu_custom_call.1} parent=31 // pred_region
          %182 = dma.done [#allocation6], 512
        $region40: #{tpu_custom_call.1} parent=31 // pred_fallthru
          _
        %s183 = sand.u32 %s29, 1
        %s184 = scalar_lea.sflag [#allocation3], %s183
        %s185 = sand.u32 %s29, 1
        %s186 = smul.addr %s185, 8
        %s187 = scalar_lea.vmem [#allocation2], %s186
        %p188 = pneg %p42
        %p189 = pneg %p39
        %p190 = pneg %p63
        %p191 = pneg %p60
        %p192 = pneg %p84
        %p193 = pneg %p81
        %p194 = pneg %p110
        %p195 = pneg %p107
        %s196 = sand.u32 %s97, 1
        %s197 = scalar_lea.sflag [#allocation4], %s196
        %s198 = sand.u32 %s97, 1
        %s199 = smul.addr %s198, 8
        %s200 = scalar_lea.vmem [#allocation7], %s199
        %v201 = vld [vmem:[%s174] sm:$0xff]
        %v202 = vld [vmem:[#allocation5] sm:$0xff]
        %v203 = vld [vmem:[#allocation5 + $0x8] sm:$0xff]
        %v204 = vld [vmem:[#allocation5 + $0x10] sm:$0xff]
        %v205 = vld [vmem:[#allocation5 + $0x18] sm:$0xff]
        %v206 = vld [vmem:[%s2] sm:$0x1]
        %v208 = vlaneseq
        %v209 = vshrl.u32 %v208, 7
        %v210 = vsub.s32 0, %v209
        %v211 = vrot.slane %v206, %v210
        %vm213 = vcmask 261120
        %v215 = vsel %vm213, %v201, 0
        %v218 = vsel %vm213, %v202, 0
        %v221 = vsel %vm213, %v203, 0
        %v224 = vsel %vm213, %v204, 0
        %v227 = vsel %vm213, %v205, 0
        %229 = vmatprep.subr.mxu0 0.0
        %230 = vmatpush1.xpose.msra.mxu0 %v218
        %231 = vmatprep.subr.mxu0 0.0
        %232 = vmatpush1.xpose.msra.mxu0 %v221
        %233 = vmatprep.subr.mxu0 0.0
        %234 = vmatpush1.xpose.msra.mxu0 %v224
        %235 = vmatprep.subr.mxu0 0.0
        %236 = vmatpush1.xpose.msra.mxu0 %v227
        %237 = vmatprep.subr.mxu0 0.0
        %238 = vmatpush1.xpose.msra.mxu0 0.0
        %239 = vmatprep.subr.mxu0 0.0
        %240 = vmatpush1.xpose.msra.mxu0 0.0
        %241 = vmatprep.subr.mxu0 0.0
        %242 = vmatpush1.xpose.msra.mxu0 0.0
        %243 = vmatprep.subr.mxu0 0.0
        %244 = vmatpush1.xpose.msra.mxu0 0.0
        %245 = vmatprep.subr.mxu0 0.0
        %246 = vmatpush1.xpose.msra.mxu0 0.0
        %247 = vmatprep.subr.mxu0 0.0
        %248 = vmatpush1.xpose.msra.mxu0 0.0
        %249 = vmatprep.subr.mxu0 0.0
        %250 = vmatpush1.xpose.msra.mxu0 0.0
        %251 = vmatprep.subr.mxu0 0.0
        %252 = vmatpush1.xpose.msra.mxu0 0.0
        %253 = vmatprep.subr.mxu0 0.0
        %254 = vmatpush1.xpose.msra.mxu0 0.0
        %255 = vmatprep.subr.mxu0 0.0
        %256 = vmatpush1.xpose.msra.mxu0 0.0
        %257 = vmatprep.subr.mxu0 0.0
        %258 = vmatpush1.xpose.msra.mxu0 0.0
        %259 = vmatprep.subr.mxu0 0.0
        %260 = vmatpush1.xpose.msra.mxu0 0.0
        %261 = vmatprep.subr.mxu0 0.0
        %262 = vmatpush1.xpose.msra.mxu0 0.0
        %263 = vmatprep.subr.mxu0 0.0
        %264 = vmatpush1.xpose.msra.mxu0 0.0
        %265 = vmatprep.subr.mxu0 0.0
        %266 = vmatpush1.xpose.msra.mxu0 0.0
        %267 = vmatprep.subr.mxu0 0.0
        %268 = vmatpush1.xpose.msra.mxu0 0.0
        %269 = vmatprep.subr.mxu0 0.0
        %270 = vmatpush1.xpose.msra.mxu0 0.0
        %271 = vmatprep.subr.mxu0 0.0
        %272 = vmatpush1.xpose.msra.mxu0 0.0
        %273 = vmatprep.subr.mxu0 0.0
        %274 = vmatpush1.xpose.msra.mxu0 0.0
        %275 = vmatprep.subr.mxu0 0.0
        %276 = vmatpush1.xpose.msra.mxu0 0.0
        %277 = vmatprep.subr.mxu0 0.0
        %278 = vmatpush1.xpose.msra.mxu0 0.0
        %279 = vmatprep.subr.mxu0 0.0
        %280 = vmatpush1.xpose.msra.mxu0 0.0
        %281 = vmatprep.subr.mxu0 0.0
        %282 = vmatpush1.xpose.msra.mxu0 0.0
        %283 = vmatprep.subr.mxu0 0.0
        %284 = vmatpush1.xpose.msra.mxu0 0.0
        %285 = vmatprep.subr.mxu0 0.0
        %286 = vmatpush1.xpose.msra.mxu0 0.0
        %287 = vmatprep.subr.mxu0 0.0
        %288 = vmatpush1.xpose.msra.mxu0 0.0
        %289 = vmatprep.subr.mxu0 0.0
        %290 = vmatpush1.xpose.msra.mxu0 0.0
        %291 = vmatprep.subr.mxu0 0.0
        %292 = vmatpush1.xpose.msra.mxu0 0.0
        %293 = vmatprep.mubr.f32.mxu0 0.0
        %294 = vmatmul.mubr.f32.gmra.mrb[0].mxu0 %v215
        %v295 = vpop.f32.mrb[0].mxu0
        %v296 = vadd.f32 %v211, %v295
        %v297 = vpop.f32.mrb[0].mxu0
        %298 = vdwg.mxu0
        %299 = vst.msk [vmem:[%s200] sm:$0xff] %vm213, %v296
        %s300 = sand.u32 %s97, 1
        %s301 = scalar_lea.sflag [#allocation4], %s300
        %s302 = sand.u32 %s97, 1
        %s303 = smul.addr %s302, 8
        %s304 = scalar_lea.vmem [#allocation7], %s303
        // Predicated region
        $region41: #{tpu_custom_call.1} parent=31 // pred_check
          %p305 = pneg %p107
        $region42: #{tpu_custom_call.1} parent=31 // pred_check_branch
          %307 = sbr.rel (%p305) target = $region44
        $region43: #{tpu_custom_call.1} parent=31 // pred_region
          %s309 = ssub.s32 128, 128
          %310 = vsyncadd %s301, %s309
          %s311 = smul.addr %s21, 128
          %s312 = scalar_lea.hbm %s3, %s311
          %s314 = sshll.u32 %s304, 4
          %s315 = int_to_ptr.vmem [resolvable:$true] %s314
          %317 = dma.vmem_to_hbm [thread:$0]  %s315, 128, %s312, %s301
        $region44: #{tpu_custom_call.1} parent=31 // pred_fallthru
          _
      $region32: #{tpu_custom_call.1} parent=5 // pred_fallthru
        _
      %p318 = scmp.le.s32.totalorder 2, %s16
      // Predicated region
      $region45: #{tpu_custom_call.1} parent=5 // pred_check
        %p319 = pneg %p318
      $region46: #{tpu_custom_call.1} parent=5 // pred_check_branch
        %321 = sbr.rel (%p319) target = $region48
      $region47: #{tpu_custom_call.1} parent=5 // pred_region
        %s322 = ssub.s32 %s16, 2
        // Predicated region
        $region49: #{tpu_custom_call.1} parent=47 // pred_check
          %p323 = pneg %p113
        $region50: #{tpu_custom_call.1} parent=47 // pred_check_branch
          %325 = sbr.rel (%p323) target = $region52
        $region51: #{tpu_custom_call.1} parent=47 // pred_region
          %s326 = sand.u32 %s98, 1
          %s327 = scalar_lea.sflag [#allocation4], %s326
          %s328 = sand.u32 %s98, 1
          %s329 = smul.addr %s328, 8
          %s330 = scalar_lea.vmem [#allocation7], %s329
          %331 = dma.done %s327, 128
        $region52: #{tpu_custom_call.1} parent=47 // pred_fallthru
          _
      $region48: #{tpu_custom_call.1} parent=5 // pred_fallthru
        _
    $region6: #{tpu_custom_call.1} parent=1 // loop_footer
      %s20 = sadd.s32 1, %s16
    $region7: #{tpu_custom_call.1} parent=1 // loop_footer_branch
      %15 = sbr.rel target = $region3
    $region8: #{tpu_custom_call.1} parent=1 // loop_exit
      _
    %332 = vsyncpa [#allocation3], 1
    %s333 = scalar_lea.sflag [#allocation3], 1
    %334 = vsyncpa %s333, 1
    %335 = vsyncpa [#allocation6], 1
    %336 = vsyncpa [#allocation4], 1
    %s337 = scalar_lea.sflag [#allocation4], 1
    %338 = vsyncpa %s337, 1

</llo_original>
